<compile_context>
chip_gen: v7x
topology: tpu7x:2x2x1
jax: 0.10.0
libtpu: 0.0.40
codegen_flags: <defaults>
</compile_context>

<pallas_src>
import math

import jax
import jax.numpy as jnp
from jax import lax
from jax.experimental import pallas as pl
from jax.experimental.pallas import tpu as pltpu


def _vmem_capacity_bytes():
    """Detected VMEM capacity; conservative (v7x) fallback if query fails."""
    try:
        return int(pltpu.get_tpu_info().vmem_capacity_bytes)
    except Exception:
        return 64 * 1024 * 1024


def make_residual_sa_kernel(embed_dim, num_heads, num_mlps, batch_block, seq_len,
                            compute_dtype):
    assert embed_dim % num_heads == 0
    E = embed_dim
    H = num_heads
    hd = E // H
    Bt = batch_block
    S = seq_len
    R = Bt * S  # token rows per grid step
    exact_softmax = jnp.dtype(compute_dtype) == jnp.dtype(jnp.float32)

    def body(x_ref, win_ref, bin_ref, wout_ref, bout_ref, wm_ref, bm_ref, o_ref):
        # ----- fused q/k/v projection (pre-transposed, q pre-scaled) ---------
        x_c = x_ref[...].reshape(R, E).astype(compute_dtype)
        qkv = (jnp.dot(x_c, win_ref[...], preferred_element_type=jnp.float32)
               + bin_ref[0])                                    # (R, 3E) f32
        qkv_c = qkv.astype(compute_dtype)                       # single cast

        # ----- multi-head attention (heads unrolled, batched over Bt) --------
        head_outs = []
        for h in range(H):
            lo = h * hd
            q_h = qkv_c[:, lo:lo + hd].reshape(Bt, S, hd)
            k_h = qkv_c[:, E + lo:E + lo + hd].reshape(Bt, S, hd)
            v_h = qkv_c[:, 2 * E + lo:2 * E + lo + hd].reshape(Bt, S, hd)

            # q . k^T without materializing a transposed k (contract last dims)
            s = lax.dot_general(q_h, k_h, (((2,), (2,)), ((0,), (0,))),
                                preferred_element_type=jnp.float32)   # (Bt,S,S)
            s = s - jnp.max(s, axis=-1, keepdims=True)
            p = jnp.exp(s)
            denom = jnp.sum(p, axis=-1, keepdims=True)
            if exact_softmax:
                p = p / denom
            else:
                p = p * pl.reciprocal(denom, approx=True)

            o_h = lax.dot_general(p.astype(compute_dtype), v_h,
                                  (((2,), (1,)), ((0,), (0,))),
                                  preferred_element_type=jnp.float32)  # (Bt,S,hd)
            head_outs.append(o_h.reshape(R, hd))

        # Concatenate heads in registers, feed straight into the out-proj
        # matmul (no VMEM scratch, no masked sub-lane-width stores).
        attn_in = jnp.concatenate(head_outs, axis=-1).astype(compute_dtype)  # (R, E)
        attn = (jnp.dot(attn_in, wout_ref[...],
                        preferred_element_type=jnp.float32)
                + bout_ref[0])                                  # (R, E) f32

        # ----- residual tanh-MLP chain ---------------------------------------
        if num_mlps == 0:
            o_ref[...] = attn.reshape(Bt, S, E).astype(o_ref.dtype)
            return

        # Re-read the residual here (short live range, see perf review).
        res = x_ref[...].reshape(R, E).astype(jnp.float32)
        y = res + jnp.tanh(
            jnp.dot(attn.astype(compute_dtype), wm_ref[0],
                    preferred_element_type=jnp.float32) + bm_ref[0])
        for i in range(1, num_mlps):
            y = y + jnp.tanh(
                jnp.dot(y.astype(compute_dtype), wm_ref[i],
                        preferred_element_type=jnp.float32) + bm_ref[i])
        o_ref[...] = y.reshape(Bt, S, E).astype(o_ref.dtype)

    if num_mlps == 0:
        def kernel(x_ref, win_ref, bin_ref, wout_ref, bout_ref, o_ref):
            body(x_ref, win_ref, bin_ref, wout_ref, bout_ref, None, None, o_ref)
    else:
        def kernel(x_ref, win_ref, bin_ref, wout_ref, bout_ref, wm_ref, bm_ref,
                   o_ref):
            body(x_ref, win_ref, bin_ref, wout_ref, bout_ref, wm_ref, bm_ref,
                 o_ref)
    return kernel


def residual_sa_pallas(x, in_proj_w, in_proj_b, out_proj_w, out_proj_b,
                       mlp_w, mlp_b, *, num_heads, batch_block=None,
                       compute_dtype=jnp.bfloat16):
    """x: (B, S, E). mlp_w: (num_mlps, E, E) (nn.Linear convention). mlp_b: (num_mlps, E)."""
    B, S, E = x.shape
    assert E % num_heads == 0
    hd = E // num_heads
    scale = 1.0 / math.sqrt(hd)
    num_mlps = 0 if mlp_w is None else int(mlp_w.shape[0])
    comp_itemsize = jnp.dtype(compute_dtype).itemsize

    vmem_cap = _vmem_capacity_bytes()

    def est_vmem(bt):
        r = bt * S
        blocks = 2 * (2 * bt * S * E * 4)                 # x + out blocks, double-buffered
        weights = ((3 * E * E + E * E + num_mlps * E * E) * comp_itemsize
                   + (4 * E + num_mlps * E) * 4)          # single-buffered weights + biases
        interm = (r * 3 * E * (4 + comp_itemsize)         # qkv (f32 + compute copy)
                  + bt * S * S * 8                        # scores/probs (one head live)
                  + 3 * r * E * 4)                        # attn concat / out-proj / MLP temps
        return blocks + weights + interm

    if batch_block is None:
        # Target R = Bt*S >= 512 for MXU M-dim, keep grid >= 2 (v7x: 2 TCs on
        # the "parallel" axis), and stay within ~60% of VMEM capacity.
        budget = int(vmem_cap * 0.6)
        divisors = [d for d in range(1, B + 1) if B % d == 0]
        cands = [d for d in divisors if B // d >= 2] or divisors
        feasible = [d for d in cands if est_vmem(d) <= budget] or [min(cands)]
        big = [d for d in feasible if d * S >= 512]
        batch_block = min(big) if big else max(feasible)
    assert B % batch_block == 0
    Bt = batch_block

    # --- wrapper-side weight prep: fold q-scale, pre-transpose, cast ----------
    w_in = in_proj_w.astype(jnp.float32).at[:E].multiply(scale)
    b_in = in_proj_b.astype(jnp.float32).at[:E].multiply(scale)
    win_t = w_in.T.astype(compute_dtype)                       # (E, 3E)
    bin2 = b_in.reshape(1, 3 * E)                              # f32
    wout_t = out_proj_w.T.astype(compute_dtype)                # (E, E)
    bout2 = out_proj_b.astype(jnp.float32).reshape(1, E)       # f32

    kernel = make_residual_sa_kernel(E, num_heads, num_mlps, Bt, S, compute_dtype)

    wbuf = pl.Buffered(1)  # grid-invariant weights: single-buffer (halve residency)
    in_specs = [
        pl.BlockSpec((Bt, S, E), lambda b: (b, 0, 0)),                          # x
        pl.BlockSpec((E, 3 * E), lambda b: (0, 0), pipeline_mode=wbuf),         # W_in^T (q pre-scaled)
        pl.BlockSpec((1, 3 * E), lambda b: (0, 0), pipeline_mode=wbuf),         # b_in
        pl.BlockSpec((E, E), lambda b: (0, 0), pipeline_mode=wbuf),             # W_out^T
        pl.BlockSpec((1, E), lambda b: (0, 0), pipeline_mode=wbuf),             # b_out
    ]
    args = [x, win_t, bin2, wout_t, bout2]
    if num_mlps > 0:
        wm_t = jnp.swapaxes(mlp_w, 1, 2).astype(compute_dtype)  # (num_mlps, E, E) transposed
        bm = mlp_b.astype(jnp.float32)                          # (num_mlps, E)
        in_specs += [
            pl.BlockSpec((num_mlps, E, E), lambda b: (0, 0, 0), pipeline_mode=wbuf),
            pl.BlockSpec((num_mlps, E), lambda b: (0, 0), pipeline_mode=wbuf),
        ]
        args += [wm_t, bm]

    grid_spec = pltpu.PrefetchScalarGridSpec(
        num_scalar_prefetch=0,
        grid=(B // Bt,),
        in_specs=in_specs,
        out_specs=pl.BlockSpec((Bt, S, E), lambda b: (b, 0, 0)),
    )

    # Advisory cost estimate so XLA can overlap neighbouring ops.
    flops = int(2 * B * S * E * (3 * E)                 # in-proj
                + 4 * B * num_heads * S * S * hd        # qk^T + pv
                + 2 * B * S * E * E                     # out-proj
                + num_mlps * 2 * B * S * E * E)         # MLPs
    transcendentals = int(B * num_heads * S * S + num_mlps * B * S * E)
    weight_elems = E * 3 * E + 3 * E + E * E + E + num_mlps * (E * E + E)
    bytes_accessed = int(2 * B * S * E * x.dtype.itemsize
                         + weight_elems * comp_itemsize)
    cost = pl.CostEstimate(flops=flops, transcendentals=transcendentals,
                           bytes_accessed=bytes_accessed)

    vmem_limit = max(32 * 1024 * 1024, int(vmem_cap * 0.8))

    return pl.pallas_call(
        kernel,
        out_shape=jax.ShapeDtypeStruct((B, S, E), x.dtype),
        grid_spec=grid_spec,
        compiler_params=pltpu.CompilerParams(
            dimension_semantics=("parallel",),
            vmem_limit_bytes=vmem_limit,
        ),
        cost_estimate=cost,
    )(*args)


def residual_sa_reference(x, in_proj_w, in_proj_b, out_proj_w, out_proj_b,
                          mlp_w, mlp_b, *, num_heads):
    """Pure-JAX f32 reference implementing torch.nn.MultiheadAttention semantics."""
    B, S, E = x.shape
    hd = E // num_heads
    qkv = jnp.einsum('bse,fe->bsf', x, in_proj_w) + in_proj_b
    q, k, v = qkv[..., :E], qkv[..., E:2 * E], qkv[..., 2 * E:]

    def split(t):  # (B,S,E) -> (B,H,S,hd)
        return t.reshape(B, S, num_heads, hd).transpose(0, 2, 1, 3)

    qh, kh, vh = split(q), split(k), split(v)
    s = jnp.einsum('bhqd,bhkd->bhqk', qh, kh) / math.sqrt(hd)
    p = jax.nn.softmax(s, axis=-1)
    o = jnp.einsum('bhqk,bhkd->bhqd', p, vh).transpose(0, 2, 1, 3).reshape(B, S, E)
    attn = jnp.einsum('bse,fe->bsf', o, out_proj_w) + out_proj_b

    num_mlps = mlp_w.shape[0]
    if num_mlps == 0:
        return attn
    y = x + jnp.tanh(jnp.einsum('bse,fe->bsf', attn, mlp_w[0]) + mlp_b[0])
    for i in range(1, num_mlps):
        y = y + jnp.tanh(jnp.einsum('bse,fe->bsf', y, mlp_w[i]) + mlp_b[i])
    return y


if __name__ == "__main__":
    B, S, E, H = 2, 8, 32, 4
    NUM_MLPS = 1  # module default

    key = jax.random.PRNGKey(0)
    ks = jax.random.split(key, 8)
    x = jax.random.normal(ks[0], (B, S, E), dtype=jnp.float32)

    # Deterministic synthetic parameters (shapes match nn.MultiheadAttention / nn.Linear).
    in_proj_w = 0.1 * jax.random.normal(ks[1], (3 * E, E), dtype=jnp.float32)
    in_proj_b = 0.1 * jax.random.normal(ks[2], (3 * E,), dtype=jnp.float32)
    out_proj_w = 0.1 * jax.random.normal(ks[3], (E, E), dtype=jnp.float32)
    out_proj_b = 0.1 * jax.random.normal(ks[4], (E,), dtype=jnp.float32)
    mlp_w = 0.1 * jax.random.normal(ks[5], (NUM_MLPS, E, E), dtype=jnp.float32)
    mlp_b = 0.1 * jax.random.normal(ks[6], (NUM_MLPS, E), dtype=jnp.float32)

    ref = residual_sa_reference(x, in_proj_w, in_proj_b, out_proj_w, out_proj_b,
                                mlp_w, mlp_b, num_heads=H)

    # Default: bf16 matmul operands, f32 accumulation (looser tolerance expected).
    out_bf16 = residual_sa_pallas(x, in_proj_w, in_proj_b, out_proj_w, out_proj_b,
                                  mlp_w, mlp_b, num_heads=H)
    out_bf16 = jax.block_until_ready(out_bf16)
    assert out_bf16.shape == (B, S, E)
    assert jnp.allclose(out_bf16, ref, atol=5e-2, rtol=5e-2), "bf16 kernel mismatch"

    # Full f32 compute with exact softmax division: tight algorithmic check.
    out_f32 = residual_sa_pallas(x, in_proj_w, in_proj_b, out_proj_w, out_proj_b,
                                 mlp_w, mlp_b, num_heads=H,
                                 compute_dtype=jnp.float32)
    out_f32 = jax.block_until_ready(out_f32)
    assert jnp.allclose(out_f32, ref, atol=1e-2, rtol=1e-2), "f32 kernel mismatch"

    # num_mlps == 0 path (attention only; no zero-sized BlockSpecs).
    mlp_w0 = jnp.zeros((0, E, E), jnp.float32)
    mlp_b0 = jnp.zeros((0, E), jnp.float32)
    ref0 = residual_sa_reference(x, in_proj_w, in_proj_b, out_proj_w, out_proj_b,
                                 mlp_w0, mlp_b0, num_heads=H)
    out0 = residual_sa_pallas(x, in_proj_w, in_proj_b, out_proj_w, out_proj_b,
                              mlp_w0, mlp_b0, num_heads=H,
                              compute_dtype=jnp.float32)
    out0 = jax.block_until_ready(out0)
    assert jnp.allclose(out0, ref0, atol=1e-2, rtol=1e-2), "num_mlps=0 mismatch"

    print("KERNEL_OK")
</pallas_src>

<mosaic_0001>
module attributes {stable_mosaic.version = 11 : i64} {
  func.func @kernel(%arg0: i32, %arg1: memref<1x8x32xf32, #tpu.memory_space<vmem>>, %arg2: memref<32x96xbf16, #tpu.memory_space<vmem>>, %arg3: memref<1x96xf32, #tpu.memory_space<vmem>>, %arg4: memref<32x32xbf16, #tpu.memory_space<vmem>>, %arg5: memref<1x32xf32, #tpu.memory_space<vmem>>, %arg6: memref<1x32x32xbf16, #tpu.memory_space<vmem>>, %arg7: memref<1x32xf32, #tpu.memory_space<vmem>>, %arg8: memref<1x8x32xf32, #tpu.memory_space<vmem>>) attributes {dimension_semantics = [#tpu.dimension_semantics<parallel>], iteration_bounds = array<i64: 2>, scalar_prefetch = 0 : i64, scratch_operands = 0 : i64, tpu.core_type = #tpu.core_type<tc>, window_params = [{transform_indices = @transform_0, window_bounds = array<i64: 1, 8, 32>}, {pipeline_mode = #tpu.pipeline_mode<synchronous>, transform_indices = @transform_1, window_bounds = array<i64: 32, 96>}, {pipeline_mode = #tpu.pipeline_mode<synchronous>, transform_indices = @transform_2, window_bounds = array<i64: 1, 96>}, {pipeline_mode = #tpu.pipeline_mode<synchronous>, transform_indices = @transform_3, window_bounds = array<i64: 32, 32>}, {pipeline_mode = #tpu.pipeline_mode<synchronous>, transform_indices = @transform_4, window_bounds = array<i64: 1, 32>}, {pipeline_mode = #tpu.pipeline_mode<synchronous>, transform_indices = @transform_5, window_bounds = array<i64: 1, 32, 32>}, {pipeline_mode = #tpu.pipeline_mode<synchronous>, transform_indices = @transform_6, window_bounds = array<i64: 1, 32>}, {transform_indices = @transform_7, window_bounds = array<i64: 1, 8, 32>}]} {
    %c0 = arith.constant 0 : index
    %c0_0 = arith.constant 0 : index
    %c0_1 = arith.constant 0 : index
    %0 = vector.load %arg1[%c0, %c0_0, %c0_1] : memref<1x8x32xf32, #tpu.memory_space<vmem>>, vector<1x8x32xf32>
    %1 = vector.shape_cast %0 : vector<1x8x32xf32> to vector<8x32xf32>
    %2 = arith.truncf %1 : vector<8x32xf32> to vector<8x32xbf16>
    %c0_2 = arith.constant 0 : index
    %c0_3 = arith.constant 0 : index
    %3 = vector.load %arg2[%c0_2, %c0_3] : memref<32x96xbf16, #tpu.memory_space<vmem>>, vector<32x96xbf16>
    %cst = arith.constant dense<0.000000e+00> : vector<8x96xf32>
    %4 = tpu.matmul %2, %3, %cst {dimension_numbers = #tpu.dot_dimension_numbers<[1], [0], [0], [1], [0, 0, 1, 1], [], []>} : vector<8x32xbf16>, vector<32x96xbf16>, vector<8x96xf32> -> vector<8x96xf32>
    %c0_4 = arith.constant 0 : index
    %c0_5 = arith.constant 0 : index
    %5 = vector.load %arg3[%c0_4, %c0_5] : memref<1x96xf32, #tpu.memory_space<vmem>>, vector<1x96xf32>
    %6 = vector.shape_cast %5 : vector<1x96xf32> to vector<96xf32>
    %7 = vector.shape_cast %6 : vector<96xf32> to vector<1x96xf32>
    %8 = vector.broadcast %7 : vector<1x96xf32> to vector<8x96xf32>
    %9 = arith.addf %4, %8 : vector<8x96xf32>
    %10 = arith.truncf %9 : vector<8x96xf32> to vector<8x96xbf16>
    %11 = vector.extract_strided_slice %10 {offsets = [0, 0], sizes = [8, 8], strides = [1, 1]} : vector<8x96xbf16> to vector<8x8xbf16>
    %12 = vector.shape_cast %11 : vector<8x8xbf16> to vector<1x8x8xbf16>
    %13 = vector.extract_strided_slice %10 {offsets = [0, 32], sizes = [8, 8], strides = [1, 1]} : vector<8x96xbf16> to vector<8x8xbf16>
    %14 = vector.shape_cast %13 : vector<8x8xbf16> to vector<1x8x8xbf16>
    %15 = vector.extract_strided_slice %10 {offsets = [0, 64], sizes = [8, 8], strides = [1, 1]} : vector<8x96xbf16> to vector<8x8xbf16>
    %16 = vector.shape_cast %15 : vector<8x8xbf16> to vector<1x8x8xbf16>
    %cst_6 = arith.constant dense<0.000000e+00> : vector<1x8x8xf32>
    %17 = tpu.matmul %12, %14, %cst_6 {dimension_numbers = #tpu.dot_dimension_numbers<[2], [2], [1], [1], [0, 0, 0, 1, 1, 1], [0], [0]>} : vector<1x8x8xbf16>, vector<1x8x8xbf16>, vector<1x8x8xf32> -> vector<1x8x8xf32>
    %cst_7 = arith.constant dense<0xFF800000> : vector<1x8xf32>
    %18 = vector.multi_reduction <maximumf>, %17, %cst_7 [2] : vector<1x8x8xf32> to vector<1x8xf32>
    %19 = vector.shape_cast %18 : vector<1x8xf32> to vector<1x8x1xf32>
    %20 = vector.broadcast %19 : vector<1x8x1xf32> to vector<1x8x8xf32>
    %21 = arith.subf %17, %20 : vector<1x8x8xf32>
    %22 = math.exp %21 : vector<1x8x8xf32>
    %cst_8 = arith.constant dense<0.000000e+00> : vector<1x8xf32>
    %23 = vector.multi_reduction <add>, %22, %cst_8 [2] : vector<1x8x8xf32> to vector<1x8xf32>
    %24 = vector.shape_cast %23 : vector<1x8xf32> to vector<1x8x1xf32>
    %25 = tpu.reciprocal %24 {approx = true} : vector<1x8x1xf32> -> vector<1x8x1xf32>
    %26 = vector.broadcast %25 : vector<1x8x1xf32> to vector<1x8x8xf32>
    %27 = arith.mulf %22, %26 : vector<1x8x8xf32>
    %28 = arith.truncf %27 : vector<1x8x8xf32> to vector<1x8x8xbf16>
    %cst_9 = arith.constant dense<0.000000e+00> : vector<1x8x8xf32>
    %29 = tpu.matmul %28, %16, %cst_9 {dimension_numbers = #tpu.dot_dimension_numbers<[2], [1], [1], [2], [0, 0, 0, 1, 1, 2], [0], [0]>} : vector<1x8x8xbf16>, vector<1x8x8xbf16>, vector<1x8x8xf32> -> vector<1x8x8xf32>
    %30 = vector.shape_cast %29 : vector<1x8x8xf32> to vector<8x8xf32>
    %31 = vector.extract_strided_slice %10 {offsets = [0, 8], sizes = [8, 8], strides = [1, 1]} : vector<8x96xbf16> to vector<8x8xbf16>
    %32 = vector.shape_cast %31 : vector<8x8xbf16> to vector<1x8x8xbf16>
    %33 = vector.extract_strided_slice %10 {offsets = [0, 40], sizes = [8, 8], strides = [1, 1]} : vector<8x96xbf16> to vector<8x8xbf16>
    %34 = vector.shape_cast %33 : vector<8x8xbf16> to vector<1x8x8xbf16>
    %35 = vector.extract_strided_slice %10 {offsets = [0, 72], sizes = [8, 8], strides = [1, 1]} : vector<8x96xbf16> to vector<8x8xbf16>
    %36 = vector.shape_cast %35 : vector<8x8xbf16> to vector<1x8x8xbf16>
    %cst_10 = arith.constant dense<0.000000e+00> : vector<1x8x8xf32>
    %37 = tpu.matmul %32, %34, %cst_10 {dimension_numbers = #tpu.dot_dimension_numbers<[2], [2], [1], [1], [0, 0, 0, 1, 1, 1], [0], [0]>} : vector<1x8x8xbf16>, vector<1x8x8xbf16>, vector<1x8x8xf32> -> vector<1x8x8xf32>
    %cst_11 = arith.constant dense<0xFF800000> : vector<1x8xf32>
    %38 = vector.multi_reduction <maximumf>, %37, %cst_11 [2] : vector<1x8x8xf32> to vector<1x8xf32>
    %39 = vector.shape_cast %38 : vector<1x8xf32> to vector<1x8x1xf32>
    %40 = vector.broadcast %39 : vector<1x8x1xf32> to vector<1x8x8xf32>
    %41 = arith.subf %37, %40 : vector<1x8x8xf32>
    %42 = math.exp %41 : vector<1x8x8xf32>
    %cst_12 = arith.constant dense<0.000000e+00> : vector<1x8xf32>
    %43 = vector.multi_reduction <add>, %42, %cst_12 [2] : vector<1x8x8xf32> to vector<1x8xf32>
    %44 = vector.shape_cast %43 : vector<1x8xf32> to vector<1x8x1xf32>
    %45 = tpu.reciprocal %44 {approx = true} : vector<1x8x1xf32> -> vector<1x8x1xf32>
    %46 = vector.broadcast %45 : vector<1x8x1xf32> to vector<1x8x8xf32>
    %47 = arith.mulf %42, %46 : vector<1x8x8xf32>
    %48 = arith.truncf %47 : vector<1x8x8xf32> to vector<1x8x8xbf16>
    %cst_13 = arith.constant dense<0.000000e+00> : vector<1x8x8xf32>
    %49 = tpu.matmul %48, %36, %cst_13 {dimension_numbers = #tpu.dot_dimension_numbers<[2], [1], [1], [2], [0, 0, 0, 1, 1, 2], [0], [0]>} : vector<1x8x8xbf16>, vector<1x8x8xbf16>, vector<1x8x8xf32> -> vector<1x8x8xf32>
    %50 = vector.shape_cast %49 : vector<1x8x8xf32> to vector<8x8xf32>
    %51 = vector.extract_strided_slice %10 {offsets = [0, 16], sizes = [8, 8], strides = [1, 1]} : vector<8x96xbf16> to vector<8x8xbf16>
    %52 = vector.shape_cast %51 : vector<8x8xbf16> to vector<1x8x8xbf16>
    %53 = vector.extract_strided_slice %10 {offsets = [0, 48], sizes = [8, 8], strides = [1, 1]} : vector<8x96xbf16> to vector<8x8xbf16>
    %54 = vector.shape_cast %53 : vector<8x8xbf16> to vector<1x8x8xbf16>
    %55 = vector.extract_strided_slice %10 {offsets = [0, 80], sizes = [8, 8], strides = [1, 1]} : vector<8x96xbf16> to vector<8x8xbf16>
    %56 = vector.shape_cast %55 : vector<8x8xbf16> to vector<1x8x8xbf16>
    %cst_14 = arith.constant dense<0.000000e+00> : vector<1x8x8xf32>
    %57 = tpu.matmul %52, %54, %cst_14 {dimension_numbers = #tpu.dot_dimension_numbers<[2], [2], [1], [1], [0, 0, 0, 1, 1, 1], [0], [0]>} : vector<1x8x8xbf16>, vector<1x8x8xbf16>, vector<1x8x8xf32> -> vector<1x8x8xf32>
    %cst_15 = arith.constant dense<0xFF800000> : vector<1x8xf32>
    %58 = vector.multi_reduction <maximumf>, %57, %cst_15 [2] : vector<1x8x8xf32> to vector<1x8xf32>
    %59 = vector.shape_cast %58 : vector<1x8xf32> to vector<1x8x1xf32>
    %60 = vector.broadcast %59 : vector<1x8x1xf32> to vector<1x8x8xf32>
    %61 = arith.subf %57, %60 : vector<1x8x8xf32>
    %62 = math.exp %61 : vector<1x8x8xf32>
    %cst_16 = arith.constant dense<0.000000e+00> : vector<1x8xf32>
    %63 = vector.multi_reduction <add>, %62, %cst_16 [2] : vector<1x8x8xf32> to vector<1x8xf32>
    %64 = vector.shape_cast %63 : vector<1x8xf32> to vector<1x8x1xf32>
    %65 = tpu.reciprocal %64 {approx = true} : vector<1x8x1xf32> -> vector<1x8x1xf32>
    %66 = vector.broadcast %65 : vector<1x8x1xf32> to vector<1x8x8xf32>
    %67 = arith.mulf %62, %66 : vector<1x8x8xf32>
    %68 = arith.truncf %67 : vector<1x8x8xf32> to vector<1x8x8xbf16>
    %cst_17 = arith.constant dense<0.000000e+00> : vector<1x8x8xf32>
    %69 = tpu.matmul %68, %56, %cst_17 {dimension_numbers = #tpu.dot_dimension_numbers<[2], [1], [1], [2], [0, 0, 0, 1, 1, 2], [0], [0]>} : vector<1x8x8xbf16>, vector<1x8x8xbf16>, vector<1x8x8xf32> -> vector<1x8x8xf32>
    %70 = vector.shape_cast %69 : vector<1x8x8xf32> to vector<8x8xf32>
    %71 = vector.extract_strided_slice %10 {offsets = [0, 24], sizes = [8, 8], strides = [1, 1]} : vector<8x96xbf16> to vector<8x8xbf16>
    %72 = vector.shape_cast %71 : vector<8x8xbf16> to vector<1x8x8xbf16>
    %73 = vector.extract_strided_slice %10 {offsets = [0, 56], sizes = [8, 8], strides = [1, 1]} : vector<8x96xbf16> to vector<8x8xbf16>
    %74 = vector.shape_cast %73 : vector<8x8xbf16> to vector<1x8x8xbf16>
    %75 = vector.extract_strided_slice %10 {offsets = [0, 88], sizes = [8, 8], strides = [1, 1]} : vector<8x96xbf16> to vector<8x8xbf16>
    %76 = vector.shape_cast %75 : vector<8x8xbf16> to vector<1x8x8xbf16>
    %cst_18 = arith.constant dense<0.000000e+00> : vector<1x8x8xf32>
    %77 = tpu.matmul %72, %74, %cst_18 {dimension_numbers = #tpu.dot_dimension_numbers<[2], [2], [1], [1], [0, 0, 0, 1, 1, 1], [0], [0]>} : vector<1x8x8xbf16>, vector<1x8x8xbf16>, vector<1x8x8xf32> -> vector<1x8x8xf32>
    %cst_19 = arith.constant dense<0xFF800000> : vector<1x8xf32>
    %78 = vector.multi_reduction <maximumf>, %77, %cst_19 [2] : vector<1x8x8xf32> to vector<1x8xf32>
    %79 = vector.shape_cast %78 : vector<1x8xf32> to vector<1x8x1xf32>
    %80 = vector.broadcast %79 : vector<1x8x1xf32> to vector<1x8x8xf32>
    %81 = arith.subf %77, %80 : vector<1x8x8xf32>
    %82 = math.exp %81 : vector<1x8x8xf32>
    %cst_20 = arith.constant dense<0.000000e+00> : vector<1x8xf32>
    %83 = vector.multi_reduction <add>, %82, %cst_20 [2] : vector<1x8x8xf32> to vector<1x8xf32>
    %84 = vector.shape_cast %83 : vector<1x8xf32> to vector<1x8x1xf32>
    %85 = tpu.reciprocal %84 {approx = true} : vector<1x8x1xf32> -> vector<1x8x1xf32>
    %86 = vector.broadcast %85 : vector<1x8x1xf32> to vector<1x8x8xf32>
    %87 = arith.mulf %82, %86 : vector<1x8x8xf32>
    %88 = arith.truncf %87 : vector<1x8x8xf32> to vector<1x8x8xbf16>
    %cst_21 = arith.constant dense<0.000000e+00> : vector<1x8x8xf32>
    %89 = tpu.matmul %88, %76, %cst_21 {dimension_numbers = #tpu.dot_dimension_numbers<[2], [1], [1], [2], [0, 0, 0, 1, 1, 2], [0], [0]>} : vector<1x8x8xbf16>, vector<1x8x8xbf16>, vector<1x8x8xf32> -> vector<1x8x8xf32>
    %90 = vector.shape_cast %89 : vector<1x8x8xf32> to vector<8x8xf32>
    %91 = tpu.concatenate %30, %50, %70, %90 in 1 : vector<8x8xf32>, vector<8x8xf32>, vector<8x8xf32>, vector<8x8xf32> -> vector<8x32xf32>
    %92 = arith.truncf %91 : vector<8x32xf32> to vector<8x32xbf16>
    %c0_22 = arith.constant 0 : index
    %c0_23 = arith.constant 0 : index
    %93 = vector.load %arg4[%c0_22, %c0_23] : memref<32x32xbf16, #tpu.memory_space<vmem>>, vector<32x32xbf16>
    %cst_24 = arith.constant dense<0.000000e+00> : vector<8x32xf32>
    %94 = tpu.matmul %92, %93, %cst_24 {dimension_numbers = #tpu.dot_dimension_numbers<[1], [0], [0], [1], [0, 0, 1, 1], [], []>} : vector<8x32xbf16>, vector<32x32xbf16>, vector<8x32xf32> -> vector<8x32xf32>
    %c0_25 = arith.constant 0 : index
    %c0_26 = arith.constant 0 : index
    %95 = vector.load %arg5[%c0_25, %c0_26] : memref<1x32xf32, #tpu.memory_space<vmem>>, vector<1x32xf32>
    %96 = vector.shape_cast %95 : vector<1x32xf32> to vector<32xf32>
    %97 = vector.shape_cast %96 : vector<32xf32> to vector<1x32xf32>
    %98 = vector.broadcast %97 : vector<1x32xf32> to vector<8x32xf32>
    %99 = arith.addf %94, %98 : vector<8x32xf32>
    %c0_27 = arith.constant 0 : index
    %c0_28 = arith.constant 0 : index
    %c0_29 = arith.constant 0 : index
    %100 = vector.load %arg1[%c0_27, %c0_28, %c0_29] : memref<1x8x32xf32, #tpu.memory_space<vmem>>, vector<1x8x32xf32>
    %101 = vector.shape_cast %100 : vector<1x8x32xf32> to vector<8x32xf32>
    %102 = arith.truncf %99 : vector<8x32xf32> to vector<8x32xbf16>
    %c0_30 = arith.constant 0 : index
    %c0_31 = arith.constant 0 : index
    %c0_32 = arith.constant 0 : index
    %103 = vector.load %arg6[%c0_30, %c0_31, %c0_32] : memref<1x32x32xbf16, #tpu.memory_space<vmem>>, vector<1x32x32xbf16>
    %104 = vector.shape_cast %103 : vector<1x32x32xbf16> to vector<32x32xbf16>
    %cst_33 = arith.constant dense<0.000000e+00> : vector<8x32xf32>
    %105 = tpu.matmul %102, %104, %cst_33 {dimension_numbers = #tpu.dot_dimension_numbers<[1], [0], [0], [1], [0, 0, 1, 1], [], []>} : vector<8x32xbf16>, vector<32x32xbf16>, vector<8x32xf32> -> vector<8x32xf32>
    %c0_34 = arith.constant 0 : index
    %c0_35 = arith.constant 0 : index
    %106 = vector.load %arg7[%c0_34, %c0_35] : memref<1x32xf32, #tpu.memory_space<vmem>>, vector<1x32xf32>
    %107 = vector.shape_cast %106 : vector<1x32xf32> to vector<32xf32>
    %108 = vector.shape_cast %107 : vector<32xf32> to vector<1x32xf32>
    %109 = vector.broadcast %108 : vector<1x32xf32> to vector<8x32xf32>
    %110 = arith.addf %105, %109 : vector<8x32xf32>
    %111 = math.tanh %110 : vector<8x32xf32>
    %112 = arith.addf %101, %111 : vector<8x32xf32>
    %113 = vector.shape_cast %112 : vector<8x32xf32> to vector<1x8x32xf32>
    %c0_36 = arith.constant 0 : index
    %c0_37 = arith.constant 0 : index
    %c0_38 = arith.constant 0 : index
    %114 = vector.load %arg8[%c0_36, %c0_37, %c0_38] : memref<1x8x32xf32, #tpu.memory_space<vmem>>, vector<1x8x32xf32>
    tpu.vector_store %arg8[%c0_36, %c0_37, %c0_38], %113 {strides = array<i32>} : memref<1x8x32xf32, #tpu.memory_space<vmem>>, vector<1x8x32xf32>,
    return
  }
  func.func @transform_0(%arg0: i32) -> (i32, i32, i32) {
    %c0_i32 = arith.constant 0 : i32
    %c0_i32_0 = arith.constant 0 : i32
    %c0_i32_1 = arith.constant 0 : i32
    return %arg0, %c0_i32, %c0_i32_0 : i32, i32, i32
  }
  func.func @transform_1(%arg0: i32) -> (i32, i32) {
    %c0_i32 = arith.constant 0 : i32
    %c0_i32_0 = arith.constant 0 : i32
    %c0_i32_1 = arith.constant 0 : i32
    return %c0_i32, %c0_i32_0 : i32, i32
  }
  func.func @transform_2(%arg0: i32) -> (i32, i32) {
    %c0_i32 = arith.constant 0 : i32
    %c0_i32_0 = arith.constant 0 : i32
    %c0_i32_1 = arith.constant 0 : i32
    return %c0_i32, %c0_i32_0 : i32, i32
  }
  func.func @transform_3(%arg0: i32) -> (i32, i32) {
    %c0_i32 = arith.constant 0 : i32
    %c0_i32_0 = arith.constant 0 : i32
    %c0_i32_1 = arith.constant 0 : i32
    return %c0_i32, %c0_i32_0 : i32, i32
  }
  func.func @transform_4(%arg0: i32) -> (i32, i32) {
    %c0_i32 = arith.constant 0 : i32
    %c0_i32_0 = arith.constant 0 : i32
    %c0_i32_1 = arith.constant 0 : i32
    return %c0_i32, %c0_i32_0 : i32, i32
  }
  func.func @transform_5(%arg0: i32) -> (i32, i32, i32) {
    %c0_i32 = arith.constant 0 : i32
    %c0_i32_0 = arith.constant 0 : i32
    %c0_i32_1 = arith.constant 0 : i32
    %c0_i32_2 = arith.constant 0 : i32
    return %c0_i32, %c0_i32_0, %c0_i32_1 : i32, i32, i32
  }
  func.func @transform_6(%arg0: i32) -> (i32, i32) {
    %c0_i32 = arith.constant 0 : i32
    %c0_i32_0 = arith.constant 0 : i32
    %c0_i32_1 = arith.constant 0 : i32
    return %c0_i32, %c0_i32_0 : i32, i32
  }
  func.func @transform_7(%arg0: i32) -> (i32, i32, i32) {
    %c0_i32 = arith.constant 0 : i32
    %c0_i32_0 = arith.constant 0 : i32
    %c0_i32_1 = arith.constant 0 : i32
    return %arg0, %c0_i32, %c0_i32_0 : i32, i32, i32
  }
}

</mosaic_0001>

<llo_original>
// kernel: tpu_custom_call.1
$region0: #{tpu_custom_call.1}
  #allocation0 [shape = 'u32[]', space=smem, size = 0x4, offset = 0x4, fixed_abs, tag = 'smem constant byte address 0x4 - core index']
  #allocation1 [shape = 'u32[144,128]{1,0:T(1,128)}', space=vmem, size = 0x12000, scoped, tag = 'internal scratch']
  %s0 = inlined_call_operand.hbm [shape: f32[2,8,32], index: 0, kind: input, shape index: {}]
  %s1 = inlined_call_operand.hbm [shape: bf16[32,96], index: 1, kind: input, shape index: {}]
  %s2 = inlined_call_operand.vmem [shape: f32[1,96], index: 2, kind: input, shape index: {}]
  %s3 = inlined_call_operand.hbm [shape: bf16[32,32], index: 3, kind: input, shape index: {}]
  %s4 = inlined_call_operand.vmem [shape: f32[1,32], index: 4, kind: input, shape index: {}]
  %s5 = inlined_call_operand.vmem [shape: bf16[1,32,32], index: 5, kind: input, shape index: {}]
  %s6 = inlined_call_operand.vmem [shape: f32[1,32], index: 6, kind: input, shape index: {}]
  %s7 = inlined_call_operand.hbm [shape: f32[2,8,32], index: 7, kind: output, shape index: {}]
  %s8 = sld [smem:[#allocation0]]
  $region73: #{tpu_custom_call.1} parent=0
    _
  %s10 = ssub.s32 1, %s8
  %s11 = scalar_select 0, %s10, %s8
  $region1: #{tpu_custom_call.1} parent=0
    #allocation2 [shape = 'u8[8192]{0}', space=vmem, size = 0x2000, scoped, tag = 'input window, operand 0']
    #allocation3 [shape = 's32[2]{0}', space=sflag, size = 0x8, scoped, tag = 'scoped memory for tpu_custom_call.1']
    #allocation4 [shape = 's32[2]{0}', space=sflag, size = 0x8, scoped, tag = 'scoped memory for tpu_custom_call.1']
    #allocation5 [shape = 'u8[8192]{0}', space=vmem, size = 0x2000, scoped, tag = 'input window, operand 1, single buffered']
    #allocation6 [shape = 's32[1]{0}', space=sflag, size = 0x4, scoped, tag = 'scoped memory for tpu_custom_call.1']
    #allocation7 [shape = 'u8[8192]{0}', space=vmem, size = 0x2000, scoped, tag = 'input window, operand 3, single buffered']
    #allocation8 [shape = 'u8[8192]{0}', space=vmem, size = 0x2000, scoped, tag = 'output window, operand 0']
    %12 = vsyncpa [#allocation3], 0
    %s13 = scalar_lea.sflag [#allocation3], 1
    %14 = vsyncpa %s13, 0
    %15 = vsyncpa [#allocation6], 0
    %16 = vsyncpa [#allocation4], 0
    %s17 = scalar_lea.sflag [#allocation4], 1
    %18 = vsyncpa %s17, 0
    loop: start=0, step=1, limit=4
    $region2: #{tpu_custom_call.1} parent=1 // loop_pre_header
      _
    $region3: #{tpu_custom_call.1} parent=1 // loop_header
      %s20 = sphi 0, %s24
      %p21 = scmp.ge.s32.totalorder %s20, 4
      %s30 = sphi 0, %s32
      %s33 = sphi 0, %s30
      %s34 = sphi 0, %s33
      %s50 = sphi 0, %s34
      %s54 = sphi 0, %s54
      %s56 = sphi 0, %s54
      %s57 = sphi 0, %s56
      %s71 = sphi 0, %s57
      %s75 = sphi 0, %s75
      %s77 = sphi 0, %s75
      %s78 = sphi 0, %s77
      %s92 = sphi 0, %s78
      %s96 = sphi 0, %s96
      %s98 = sphi 0, %s96
      %s99 = sphi 0, %s98
      %s113 = sphi 0, %s99
      %s117 = sphi 0, %s117
      %s119 = sphi 0, %s117
      %s120 = sphi 0, %s119
      %s134 = sphi 0, %s120
      %s138 = sphi 0, %s138
      %s140 = sphi 0, %s138
      %s141 = sphi 0, %s140
      %s155 = sphi 0, %s141
      %s159 = sphi 0, %s159
      %s161 = sphi 0, %s159
      %s162 = sphi 0, %s161
      %s176 = sphi 0, %s162
      %s182 = sphi 0, %s184
      %s185 = sphi 0, %s182
      %s186 = sphi 0, %s185
      %s202 = sphi 0, %s186
    $region4: #{tpu_custom_call.1} parent=1 // loop_header_branch
      %23 = sbr.rel (%p21) target = $region8
    $region5: #{tpu_custom_call.1} parent=1 // loop_body
      %s25 = ssub.s32 %s20, 1
      %s26 = ssub.s32 %s20, 2
      %s27 = sadd.s32 %s20, 1
      %s28 = ssub.s32 %s20, %s27
      %p29 = scmp.eq.s32.totalorder %s28, 0
      %s31 = sadd.s32 %s30, 1
      %s32 = scalar_select %p29, %s30, %s31
      %p35 = pneg %p29
      %p36 = scmp.eq.s32.totalorder %s20, 1
      %p37 = por %p35, %p36
      %p38 = scmp.ne.s32.totalorder %s30, %s33
      %p39 = scmp.eq.s32.totalorder %s20, 0
      %p40 = por %p38, %p39
      %p41 = scmp.ne.s32.totalorder %s30, %s33
      %p42 = scmp.eq.s32.totalorder %s25, 1
      %p43 = por %p41, %p42
      %p44 = scmp.ne.s32.totalorder %s33, %s34
      %p45 = scmp.eq.s32.totalorder %s25, 0
      %p46 = por %p44, %p45
      %p47 = scmp.ne.s32.totalorder %s33, %s34
      %p48 = scmp.eq.s32.totalorder %s26, 1
      %p49 = por %p47, %p48
      %p51 = scmp.ne.s32.totalorder %s34, %s50
      %p52 = scmp.eq.s32.totalorder %s26, 0
      %p53 = por %p51, %p52
      %s55 = sadd.s32 %s54, 1
      %p58 = scmp.eq.s32.totalorder %s20, 1
      %p59 = scmp.ne.s32.totalorder %s54, %s56
      %p60 = scmp.eq.s32.totalorder %s20, 0
      %p61 = por %p59, %p60
      %p62 = scmp.ne.s32.totalorder %s54, %s56
      %p63 = scmp.eq.s32.totalorder %s25, 1
      %p64 = por %p62, %p63
      %p65 = scmp.ne.s32.totalorder %s56, %s57
      %p66 = scmp.eq.s32.totalorder %s25, 0
      %p67 = por %p65, %p66
      %p68 = scmp.ne.s32.totalorder %s56, %s57
      %p69 = scmp.eq.s32.totalorder %s26, 1
      %p70 = por %p68, %p69
      %p72 = scmp.ne.s32.totalorder %s57, %s71
      %p73 = scmp.eq.s32.totalorder %s26, 0
      %p74 = por %p72, %p73
      %s76 = sadd.s32 %s75, 1
      %p79 = scmp.eq.s32.totalorder %s20, 1
      %p80 = scmp.ne.s32.totalorder %s75, %s77
      %p81 = scmp.eq.s32.totalorder %s20, 0
      %p82 = por %p80, %p81
      %p83 = scmp.ne.s32.totalorder %s75, %s77
      %p84 = scmp.eq.s32.totalorder %s25, 1
      %p85 = por %p83, %p84
      %p86 = scmp.ne.s32.totalorder %s77, %s78
      %p87 = scmp.eq.s32.totalorder %s25, 0
      %p88 = por %p86, %p87
      %p89 = scmp.ne.s32.totalorder %s77, %s78
      %p90 = scmp.eq.s32.totalorder %s26, 1
      %p91 = por %p89, %p90
      %p93 = scmp.ne.s32.totalorder %s78, %s92
      %p94 = scmp.eq.s32.totalorder %s26, 0
      %p95 = por %p93, %p94
      %s97 = sadd.s32 %s96, 1
      %p100 = scmp.eq.s32.totalorder %s20, 1
      %p101 = scmp.ne.s32.totalorder %s96, %s98
      %p102 = scmp.eq.s32.totalorder %s20, 0
      %p103 = por %p101, %p102
      %p104 = scmp.ne.s32.totalorder %s96, %s98
      %p105 = scmp.eq.s32.totalorder %s25, 1
      %p106 = por %p104, %p105
      %p107 = scmp.ne.s32.totalorder %s98, %s99
      %p108 = scmp.eq.s32.totalorder %s25, 0
      %p109 = por %p107, %p108
      %p110 = scmp.ne.s32.totalorder %s98, %s99
      %p111 = scmp.eq.s32.totalorder %s26, 1
      %p112 = por %p110, %p111
      %p114 = scmp.ne.s32.totalorder %s99, %s113
      %p115 = scmp.eq.s32.totalorder %s26, 0
      %p116 = por %p114, %p115
      %s118 = sadd.s32 %s117, 1
      %p121 = scmp.eq.s32.totalorder %s20, 1
      %p122 = scmp.ne.s32.totalorder %s117, %s119
      %p123 = scmp.eq.s32.totalorder %s20, 0
      %p124 = por %p122, %p123
      %p125 = scmp.ne.s32.totalorder %s117, %s119
      %p126 = scmp.eq.s32.totalorder %s25, 1
      %p127 = por %p125, %p126
      %p128 = scmp.ne.s32.totalorder %s119, %s120
      %p129 = scmp.eq.s32.totalorder %s25, 0
      %p130 = por %p128, %p129
      %p131 = scmp.ne.s32.totalorder %s119, %s120
      %p132 = scmp.eq.s32.totalorder %s26, 1
      %p133 = por %p131, %p132
      %p135 = scmp.ne.s32.totalorder %s120, %s134
      %p136 = scmp.eq.s32.totalorder %s26, 0
      %p137 = por %p135, %p136
      %s139 = sadd.s32 %s138, 1
      %p142 = scmp.eq.s32.totalorder %s20, 1
      %p143 = scmp.ne.s32.totalorder %s138, %s140
      %p144 = scmp.eq.s32.totalorder %s20, 0
      %p145 = por %p143, %p144
      %p146 = scmp.ne.s32.totalorder %s138, %s140
      %p147 = scmp.eq.s32.totalorder %s25, 1
      %p148 = por %p146, %p147
      %p149 = scmp.ne.s32.totalorder %s140, %s141
      %p150 = scmp.eq.s32.totalorder %s25, 0
      %p151 = por %p149, %p150
      %p152 = scmp.ne.s32.totalorder %s140, %s141
      %p153 = scmp.eq.s32.totalorder %s26, 1
      %p154 = por %p152, %p153
      %p156 = scmp.ne.s32.totalorder %s141, %s155
      %p157 = scmp.eq.s32.totalorder %s26, 0
      %p158 = por %p156, %p157
      %s160 = sadd.s32 %s159, 1
      %p163 = scmp.eq.s32.totalorder %s20, 1
      %p164 = scmp.ne.s32.totalorder %s159, %s161
      %p165 = scmp.eq.s32.totalorder %s20, 0
      %p166 = por %p164, %p165
      %p167 = scmp.ne.s32.totalorder %s159, %s161
      %p168 = scmp.eq.s32.totalorder %s25, 1
      %p169 = por %p167, %p168
      %p170 = scmp.ne.s32.totalorder %s161, %s162
      %p171 = scmp.eq.s32.totalorder %s25, 0
      %p172 = por %p170, %p171
      %p173 = scmp.ne.s32.totalorder %s161, %s162
      %p174 = scmp.eq.s32.totalorder %s26, 1
      %p175 = por %p173, %p174
      %p177 = scmp.ne.s32.totalorder %s162, %s176
      %p178 = scmp.eq.s32.totalorder %s26, 0
      %p179 = por %p177, %p178
      %s180 = ssub.s32 %s20, %s27
      %p181 = scmp.eq.s32.totalorder %s180, 0
      %s183 = sadd.s32 %s182, 1
      %s184 = scalar_select %p181, %s182, %s183
      %p187 = pneg %p181
      %p188 = scmp.eq.s32.totalorder %s20, 1
      %p189 = por %p187, %p188
      %p190 = scmp.ne.s32.totalorder %s182, %s185
      %p191 = scmp.eq.s32.totalorder %s20, 0
      %p192 = por %p190, %p191
      %p193 = scmp.ne.s32.totalorder %s182, %s185
      %p194 = scmp.eq.s32.totalorder %s25, 1
      %p195 = por %p193, %p194
      %p196 = scmp.ne.s32.totalorder %s185, %s186
      %p197 = scmp.eq.s32.totalorder %s25, 0
      %p198 = por %p196, %p197
      %p199 = scmp.ne.s32.totalorder %s185, %s186
      %p200 = scmp.eq.s32.totalorder %s26, 1
      %p201 = por %p199, %p200
      %p203 = scmp.ne.s32.totalorder %s186, %s202
      %p204 = scmp.eq.s32.totalorder %s26, 0
      %p205 = por %p203, %p204
      %p206 = scmp.le.s32.totalorder 1, %s20
      %p207 = scmp.lt.s32.totalorder %s20, 3
      %p208 = pnand %p206, %p207
      %p209 = pneg %p208
      // Predicated region
      $region9: #{tpu_custom_call.1} parent=5 // pred_check
        _
      $region10: #{tpu_custom_call.1} parent=5 // pred_check_branch
        %211 = sbr.rel (%p208) target = $region12
      $region11: #{tpu_custom_call.1} parent=5 // pred_region
        %s212 = ssub.s32 %s20, 1
        // Predicated region
        $region13: #{tpu_custom_call.1} parent=11 // pred_check
          %p213 = pneg %p67
        $region14: #{tpu_custom_call.1} parent=11 // pred_check_branch
          %215 = sbr.rel (%p213) target = $region16
        $region15: #{tpu_custom_call.1} parent=11 // pred_region
          %s217 = ssub.s32 256, 256
          %218 = vsyncadd [#allocation6], %s217
          %s219 = sshll.u32 [#allocation5], 4
          %s220 = int_to_ptr.vmem [resolvable:$true] %s219
          %225 = dma.hbm_to_vmem [thread:$0]  %s1, 256, %s220, [#allocation6], 64, 64, 4
        $region16: #{tpu_custom_call.1} parent=11 // pred_fallthru
          _
        // Predicated region
        $region17: #{tpu_custom_call.1} parent=11 // pred_check
          %p226 = pneg %p88
        $region18: #{tpu_custom_call.1} parent=11 // pred_check_branch
          %228 = sbr.rel (%p226) target = $region20
        $region19: #{tpu_custom_call.1} parent=11 // pred_region
          _
        $region20: #{tpu_custom_call.1} parent=11 // pred_fallthru
          _
        // Predicated region
        $region21: #{tpu_custom_call.1} parent=11 // pred_check
          %p229 = pneg %p109
        $region22: #{tpu_custom_call.1} parent=11 // pred_check_branch
          %231 = sbr.rel (%p229) target = $region24
        $region23: #{tpu_custom_call.1} parent=11 // pred_region
          %s233 = ssub.s32 256, 256
          %234 = vsyncadd [#allocation6], %s233
          %s235 = sshll.u32 [#allocation7], 4
          %s236 = int_to_ptr.vmem [resolvable:$true] %s235
          %241 = dma.hbm_to_vmem [thread:$0]  %s3, 256, %s236, [#allocation6], 64, 64, 4
        $region24: #{tpu_custom_call.1} parent=11 // pred_fallthru
          _
        // Predicated region
        $region25: #{tpu_custom_call.1} parent=11 // pred_check
          %p242 = pneg %p130
        $region26: #{tpu_custom_call.1} parent=11 // pred_check_branch
          %244 = sbr.rel (%p242) target = $region28
        $region27: #{tpu_custom_call.1} parent=11 // pred_region
          _
        $region28: #{tpu_custom_call.1} parent=11 // pred_fallthru
          _
        // Predicated region
        $region29: #{tpu_custom_call.1} parent=11 // pred_check
          %p245 = pneg %p151
        $region30: #{tpu_custom_call.1} parent=11 // pred_check_branch
          %247 = sbr.rel (%p245) target = $region32
        $region31: #{tpu_custom_call.1} parent=11 // pred_region
          _
        $region32: #{tpu_custom_call.1} parent=11 // pred_fallthru
          _
        // Predicated region
        $region33: #{tpu_custom_call.1} parent=11 // pred_check
          %p248 = pneg %p172
        $region34: #{tpu_custom_call.1} parent=11 // pred_check_branch
          %250 = sbr.rel (%p248) target = $region36
        $region35: #{tpu_custom_call.1} parent=11 // pred_region
          _
        $region36: #{tpu_custom_call.1} parent=11 // pred_fallthru
          _
      $region12: #{tpu_custom_call.1} parent=5 // pred_fallthru
        _
      %p251 = scmp.lt.s32.totalorder %s20, 2
      // Predicated region
      $region37: #{tpu_custom_call.1} parent=5 // pred_check
        %p252 = pneg %p251
      $region38: #{tpu_custom_call.1} parent=5 // pred_check_branch
        %254 = sbr.rel (%p252) target = $region40
      $region39: #{tpu_custom_call.1} parent=5 // pred_region
        // Predicated region
        $region41: #{tpu_custom_call.1} parent=39 // pred_check
          %p255 = pneg %p40
        $region42: #{tpu_custom_call.1} parent=39 // pred_check_branch
          %257 = sbr.rel (%p255) target = $region44
        $region43: #{tpu_custom_call.1} parent=39 // pred_region
          %s258 = sand.u32 %s30, 1
          %s259 = scalar_lea.sflag [#allocation3], %s258
          %s260 = sand.u32 %s30, 1
          %s261 = smul.addr %s260, 8
          %s262 = scalar_lea.vmem [#allocation2], %s261
          %s264 = ssub.s32 128, 128
          %265 = vsyncadd %s259, %s264
          %s266 = smul.addr %s20, 128
          %s267 = scalar_lea.hbm %s0, %s266
          %s269 = sshll.u32 %s262, 4
          %s270 = int_to_ptr.vmem [resolvable:$true] %s269
          %272 = dma.hbm_to_vmem [thread:$0]  %s267, 128, %s270, %s259
        $region44: #{tpu_custom_call.1} parent=39 // pred_fallthru
          _
      $region40: #{tpu_custom_call.1} parent=5 // pred_fallthru
        _
      %p273 = scmp.le.s32.totalorder 1, %s20
      %p274 = scmp.lt.s32.totalorder %s20, 3
      %p275 = pnand %p273, %p274
      %p276 = pneg %p275
      // Predicated region
      $region45: #{tpu_custom_call.1} parent=5 // pred_check
        _
      $region46: #{tpu_custom_call.1} parent=5 // pred_check_branch
        %278 = sbr.rel (%p275) target = $region48
      $region47: #{tpu_custom_call.1} parent=5 // pred_region
        %s279 = ssub.s32 %s20, 1
        %s280 = sand.u32 %s33, 1
        %s281 = scalar_lea.sflag [#allocation3], %s280
        %s282 = sand.u32 %s33, 1
        %s283 = smul.addr %s282, 8
        %s284 = scalar_lea.vmem [#allocation2], %s283
        // Predicated region
        $region49: #{tpu_custom_call.1} parent=47 // pred_check
          %p285 = pneg %p46
        $region50: #{tpu_custom_call.1} parent=47 // pred_check_branch
          %287 = sbr.rel (%p285) target = $region52
        $region51: #{tpu_custom_call.1} parent=47 // pred_region
          %288 = dma.done %s281, 128
        $region52: #{tpu_custom_call.1} parent=47 // pred_fallthru
          _
        // Predicated region
        $region53: #{tpu_custom_call.1} parent=47 // pred_check
          %p289 = pneg %p67
        $region54: #{tpu_custom_call.1} parent=47 // pred_check_branch
          %291 = sbr.rel (%p289) target = $region56
        $region55: #{tpu_custom_call.1} parent=47 // pred_region
          %292 = dma.done [#allocation6], 256
        $region56: #{tpu_custom_call.1} parent=47 // pred_fallthru
          _
        // Predicated region
        $region57: #{tpu_custom_call.1} parent=47 // pred_check
          %p293 = pneg %p109
        $region58: #{tpu_custom_call.1} parent=47 // pred_check_branch
          %295 = sbr.rel (%p293) target = $region60
        $region59: #{tpu_custom_call.1} parent=47 // pred_region
          %296 = dma.done [#allocation6], 256
        $region60: #{tpu_custom_call.1} parent=47 // pred_fallthru
          _
        %s297 = sand.u32 %s33, 1
        %s298 = scalar_lea.sflag [#allocation3], %s297
        %s299 = sand.u32 %s33, 1
        %s300 = smul.addr %s299, 8
        %s301 = scalar_lea.vmem [#allocation2], %s300
        %p302 = pneg %p46
        %p303 = pneg %p43
        %p304 = pneg %p67
        %p305 = pneg %p64
        %p306 = pneg %p88
        %p307 = pneg %p85
        %p308 = pneg %p109
        %p309 = pneg %p106
        %p310 = pneg %p130
        %p311 = pneg %p127
        %p312 = pneg %p151
        %p313 = pneg %p148
        %p314 = pneg %p172
        %p315 = pneg %p169
        %p316 = pneg %p198
        %p317 = pneg %p195
        %s318 = sand.u32 %s185, 1
        %s319 = scalar_lea.sflag [#allocation4], %s318
        %s320 = sand.u32 %s185, 1
        %s321 = smul.addr %s320, 8
        %s322 = scalar_lea.vmem [#allocation8], %s321
        %v324 = vld [vmem:[%s284] sm:$0xff]
        %v325 = vpack.c.bf16 %v324, %v324
        %v326 = vld [vmem:[#allocation5] sm:$0xf]
        %v327 = vld [vmem:[#allocation5 + $0x4] sm:$0xf]
        %v328 = vld [vmem:[#allocation5 + $0x8] sm:$0xf]
        %v329 = vld [vmem:[#allocation5 + $0xc] sm:$0xf]
        %v330 = vld [vmem:[%s2] sm:$0x1]
        %v332 = vlaneseq
        %v333 = vshrl.u32 %v332, 7
        %v334 = vsub.s32 0, %v333
        %v335 = vrot.slane %v330, %v334
        %v341 = vunpack.c.l.b16 %v326
        %v342 = vunpack.c.l.b16 %v327
        %v343 = vunpack.c.l.b16 %v328
        %v344 = vunpack.c.l.b16 %v329
        %v345 = vpack.c.b16 %v342, %v341
        %v346 = vpack.c.b16 %v344, %v343
        %vm349 = vcmask 261120
        %v351 = vsel %vm349, %v325, 0
        %353 = vmatprep.subr.bf16.mxu0 0
        %354 = vmatpush1.bf16.msra.mxu0 %v345
        %355 = vmatprep.subr.bf16.mxu0 0
        %356 = vmatpush1.bf16.msra.mxu0 %v346
        %357 = vmatprep.subr.bf16.mxu0 0
        %358 = vmatpush1.bf16.msra.mxu0 0
        %359 = vmatprep.subr.bf16.mxu0 0
        %360 = vmatpush1.bf16.msra.mxu0 0
        %361 = vmatprep.subr.bf16.mxu0 0
        %362 = vmatpush1.bf16.msra.mxu0 0
        %363 = vmatprep.subr.bf16.mxu0 0
        %364 = vmatpush1.bf16.msra.mxu0 0
        %365 = vmatprep.subr.bf16.mxu0 0
        %366 = vmatpush1.bf16.msra.mxu0 0
        %367 = vmatprep.subr.bf16.mxu0 0
        %368 = vmatpush1.bf16.msra.mxu0 0
        %369 = vmatprep.subr.bf16.mxu0 0
        %370 = vmatpush1.bf16.msra.mxu0 0
        %371 = vmatprep.subr.bf16.mxu0 0
        %372 = vmatpush1.bf16.msra.mxu0 0
        %373 = vmatprep.subr.bf16.mxu0 0
        %374 = vmatpush1.bf16.msra.mxu0 0
        %375 = vmatprep.subr.bf16.mxu0 0
        %376 = vmatpush1.bf16.msra.mxu0 0
        %377 = vmatprep.subr.bf16.mxu0 0
        %378 = vmatpush1.bf16.msra.mxu0 0
        %379 = vmatprep.subr.bf16.mxu0 0
        %380 = vmatpush1.bf16.msra.mxu0 0
        %381 = vmatprep.subr.bf16.mxu0 0
        %382 = vmatpush1.bf16.msra.mxu0 0
        %383 = vmatprep.subr.bf16.mxu0 0
        %384 = vmatpush1.bf16.msra.mxu0 0
        %385 = vmatprep.mubr.bf16.mxu0 0
        %386 = vmatmul.mubr.bf16.gmra.mrb[0].mxu0 %v351
        %v387 = vpop.f32.mrb[0].mxu0
        %v388 = vadd.f32 %v335, %v387
        %v389 = vpop.f32.mrb[0].mxu0
        %v390 = vpop.f32.mrb[0].mxu0
        %v391 = vpop.f32.mrb[0].mxu0
        %392 = vdwg.mxu0
        %v393 = vpack.c.bf16 %v388, %v388
        %395 = vrot.lane.b32.xlu0 %v393, 96
        %v396 = vpop.permute.xlu0 %395
        %vm397 = vcmask 64512
        %v399 = vsel %vm397, %v393, 0
        %v402 = vsel %vm397, %v396, 0
        %404 = vmatprep.subr.bf16.mxu0 0
        %405 = vmatpush1.bf16.xpose.msra.mxu0 %v402
        %406 = vmatprep.subr.bf16.mxu0 0
        %407 = vmatpush1.bf16.xpose.msra.mxu0 0
        %408 = vmatprep.subr.bf16.mxu0 0
        %409 = vmatpush1.bf16.xpose.msra.mxu0 0
        %410 = vmatprep.subr.bf16.mxu0 0
        %411 = vmatpush1.bf16.xpose.msra.mxu0 0
        %412 = vmatprep.subr.bf16.mxu0 0
        %413 = vmatpush1.bf16.xpose.msra.mxu0 0
        %414 = vmatprep.subr.bf16.mxu0 0
        %415 = vmatpush1.bf16.xpose.msra.mxu0 0
        %416 = vmatprep.subr.bf16.mxu0 0
        %417 = vmatpush1.bf16.xpose.msra.mxu0 0
        %418 = vmatprep.subr.bf16.mxu0 0
        %419 = vmatpush1.bf16.xpose.msra.mxu0 0
        %420 = vmatprep.subr.bf16.mxu0 0
        %421 = vmatpush1.bf16.xpose.msra.mxu0 0
        %422 = vmatprep.subr.bf16.mxu0 0
        %423 = vmatpush1.bf16.xpose.msra.mxu0 0
        %424 = vmatprep.subr.bf16.mxu0 0
        %425 = vmatpush1.bf16.xpose.msra.mxu0 0
        %426 = vmatprep.subr.bf16.mxu0 0
        %427 = vmatpush1.bf16.xpose.msra.mxu0 0
        %428 = vmatprep.subr.bf16.mxu0 0
        %429 = vmatpush1.bf16.xpose.msra.mxu0 0
        %430 = vmatprep.subr.bf16.mxu0 0
        %431 = vmatpush1.bf16.xpose.msra.mxu0 0
        %432 = vmatprep.subr.bf16.mxu0 0
        %433 = vmatpush1.bf16.xpose.msra.mxu0 0
        %434 = vmatprep.subr.bf16.mxu0 0
        %435 = vmatpush1.bf16.xpose.msra.mxu0 0
        %436 = vmatprep.mubr.bf16.mxu0 0
        %437 = vmatmul.mubr.bf16.gmra.mrb[0].mxu0 %v399
        %v438 = vpop.f32.mrb[0].mxu0
        %v439 = vadd.f32 0.0, %v438
        %v440 = vpop.f32.mrb[0].mxu0
        %v441 = vpop.f32.mrb[0].mxu0
        %v442 = vpop.f32.mrb[0].mxu0
        %443 = vdwg.mxu0
        %v444 = vsel %vm397, %v439, -inf
        %445 = vmax.xlane.f32.xlu0 %v444
        %v446 = vpop.xlane.xlu0 %445
        %v447 = vsub.f32 %v439, %v446
        %v448 = vmul.f32 %v447, 1.442695
        %v449 = vpow.pop %v448
        %v450 = vsel %vm397, %v449, 0.0
        %451 = vadd.xlane.f32.xlu0 %v450
        %v452 = vpop.xlane.xlu0 %451
        %v453 = vrcp.pop %v452
        %v454 = vmul.f32 %v449, %v453
        %v455 = vpack.c.bf16 %v454, %v454
        %456 = vrot.lane.b32.xlu0 %v393, 64
        %v457 = vpop.permute.xlu0 %456
        %v459 = vsel %vm397, %v455, 0
        %vm461 = vcmask 1043456
        %v463 = vsel %vm461, %v457, 0
        %465 = vmatprep.subr.bf16.mxu0 0
        %466 = vmatpush1.bf16.msra.mxu0 %v463
        %467 = vmatprep.subr.bf16.mxu0 0
        %468 = vmatpush1.bf16.msra.mxu0 0
        %469 = vmatprep.subr.bf16.mxu0 0
        %470 = vmatpush1.bf16.msra.mxu0 0
        %471 = vmatprep.subr.bf16.mxu0 0
        %472 = vmatpush1.bf16.msra.mxu0 0
        %473 = vmatprep.subr.bf16.mxu0 0
        %474 = vmatpush1.bf16.msra.mxu0 0
        %475 = vmatprep.subr.bf16.mxu0 0
        %476 = vmatpush1.bf16.msra.mxu0 0
        %477 = vmatprep.subr.bf16.mxu0 0
        %478 = vmatpush1.bf16.msra.mxu0 0
        %479 = vmatprep.subr.bf16.mxu0 0
        %480 = vmatpush1.bf16.msra.mxu0 0
        %481 = vmatprep.subr.bf16.mxu0 0
        %482 = vmatpush1.bf16.msra.mxu0 0
        %483 = vmatprep.subr.bf16.mxu0 0
        %484 = vmatpush1.bf16.msra.mxu0 0
        %485 = vmatprep.subr.bf16.mxu0 0
        %486 = vmatpush1.bf16.msra.mxu0 0
        %487 = vmatprep.subr.bf16.mxu0 0
        %488 = vmatpush1.bf16.msra.mxu0 0
        %489 = vmatprep.subr.bf16.mxu0 0
        %490 = vmatpush1.bf16.msra.mxu0 0
        %491 = vmatprep.subr.bf16.mxu0 0
        %492 = vmatpush1.bf16.msra.mxu0 0
        %493 = vmatprep.subr.bf16.mxu0 0
        %494 = vmatpush1.bf16.msra.mxu0 0
        %495 = vmatprep.subr.bf16.mxu0 0
        %496 = vmatpush1.bf16.msra.mxu0 0
        %497 = vmatprep.mubr.bf16.mxu0 0
        %498 = vmatmul.mubr.bf16.gmra.mrb[0].mxu0 %v459
        %v499 = vpop.f32.mrb[0].mxu0
        %v500 = vadd.f32 0.0, %v499
        %v501 = vpop.f32.mrb[0].mxu0
        %v502 = vpop.f32.mrb[0].mxu0
        %v503 = vpop.f32.mrb[0].mxu0
        %504 = vdwg.mxu0
        %505 = vrot.lane.b32.xlu0 %v393, 120
        %v506 = vpop.permute.xlu0 %505
        %507 = vrot.lane.b32.xlu0 %v393, 88
        %v508 = vpop.permute.xlu0 %507
        %v510 = vsel %vm397, %v506, 0
        %v513 = vsel %vm397, %v508, 0
        %515 = vmatprep.subr.bf16.mxu0 0
        %516 = vmatpush1.bf16.xpose.msra.mxu0 %v513
        %517 = vmatprep.subr.bf16.mxu0 0
        %518 = vmatpush1.bf16.xpose.msra.mxu0 0
        %519 = vmatprep.subr.bf16.mxu0 0
        %520 = vmatpush1.bf16.xpose.msra.mxu0 0
        %521 = vmatprep.subr.bf16.mxu0 0
        %522 = vmatpush1.bf16.xpose.msra.mxu0 0
        %523 = vmatprep.subr.bf16.mxu0 0
        %524 = vmatpush1.bf16.xpose.msra.mxu0 0
        %525 = vmatprep.subr.bf16.mxu0 0
        %526 = vmatpush1.bf16.xpose.msra.mxu0 0
        %527 = vmatprep.subr.bf16.mxu0 0
        %528 = vmatpush1.bf16.xpose.msra.mxu0 0
        %529 = vmatprep.subr.bf16.mxu0 0
        %530 = vmatpush1.bf16.xpose.msra.mxu0 0
        %531 = vmatprep.subr.bf16.mxu0 0
        %532 = vmatpush1.bf16.xpose.msra.mxu0 0
        %533 = vmatprep.subr.bf16.mxu0 0
        %534 = vmatpush1.bf16.xpose.msra.mxu0 0
        %535 = vmatprep.subr.bf16.mxu0 0
        %536 = vmatpush1.bf16.xpose.msra.mxu0 0
        %537 = vmatprep.subr.bf16.mxu0 0
        %538 = vmatpush1.bf16.xpose.msra.mxu0 0
        %539 = vmatprep.subr.bf16.mxu0 0
        %540 = vmatpush1.bf16.xpose.msra.mxu0 0
        %541 = vmatprep.subr.bf16.mxu0 0
        %542 = vmatpush1.bf16.xpose.msra.mxu0 0
        %543 = vmatprep.subr.bf16.mxu0 0
        %544 = vmatpush1.bf16.xpose.msra.mxu0 0
        %545 = vmatprep.subr.bf16.mxu0 0
        %546 = vmatpush1.bf16.xpose.msra.mxu0 0
        %547 = vmatprep.mubr.bf16.mxu0 0
        %548 = vmatmul.mubr.bf16.gmra.mrb[0].mxu0 %v510
        %v549 = vpop.f32.mrb[0].mxu0
        %v550 = vadd.f32 0.0, %v549
        %v551 = vpop.f32.mrb[0].mxu0
        %v552 = vpop.f32.mrb[0].mxu0
        %v553 = vpop.f32.mrb[0].mxu0
        %554 = vdwg.mxu0
        %v555 = vsel %vm397, %v550, -inf
        %556 = vmax.xlane.f32.xlu0 %v555
        %v557 = vpop.xlane.xlu0 %556
        %v558 = vsub.f32 %v550, %v557
        %v559 = vmul.f32 %v558, 1.442695
        %v560 = vpow.pop %v559
        %v561 = vsel %vm397, %v560, 0.0
        %562 = vadd.xlane.f32.xlu0 %v561
        %v563 = vpop.xlane.xlu0 %562
        %v564 = vrcp.pop %v563
        %v565 = vmul.f32 %v560, %v564
        %v566 = vpack.c.bf16 %v565, %v565
        %567 = vrot.lane.b32.xlu0 %v393, 56
        %v568 = vpop.permute.xlu0 %567
        %v570 = vsel %vm397, %v566, 0
        %v573 = vsel %vm461, %v568, 0
        %575 = vmatprep.subr.bf16.mxu0 0
        %576 = vmatpush1.bf16.msra.mxu0 %v573
        %577 = vmatprep.subr.bf16.mxu0 0
        %578 = vmatpush1.bf16.msra.mxu0 0
        %579 = vmatprep.subr.bf16.mxu0 0
        %580 = vmatpush1.bf16.msra.mxu0 0
        %581 = vmatprep.subr.bf16.mxu0 0
        %582 = vmatpush1.bf16.msra.mxu0 0
        %583 = vmatprep.subr.bf16.mxu0 0
        %584 = vmatpush1.bf16.msra.mxu0 0
        %585 = vmatprep.subr.bf16.mxu0 0
        %586 = vmatpush1.bf16.msra.mxu0 0
        %587 = vmatprep.subr.bf16.mxu0 0
        %588 = vmatpush1.bf16.msra.mxu0 0
        %589 = vmatprep.subr.bf16.mxu0 0
        %590 = vmatpush1.bf16.msra.mxu0 0
        %591 = vmatprep.subr.bf16.mxu0 0
        %592 = vmatpush1.bf16.msra.mxu0 0
        %593 = vmatprep.subr.bf16.mxu0 0
        %594 = vmatpush1.bf16.msra.mxu0 0
        %595 = vmatprep.subr.bf16.mxu0 0
        %596 = vmatpush1.bf16.msra.mxu0 0
        %597 = vmatprep.subr.bf16.mxu0 0
        %598 = vmatpush1.bf16.msra.mxu0 0
        %599 = vmatprep.subr.bf16.mxu0 0
        %600 = vmatpush1.bf16.msra.mxu0 0
        %601 = vmatprep.subr.bf16.mxu0 0
        %602 = vmatpush1.bf16.msra.mxu0 0
        %603 = vmatprep.subr.bf16.mxu0 0
        %604 = vmatpush1.bf16.msra.mxu0 0
        %605 = vmatprep.subr.bf16.mxu0 0
        %606 = vmatpush1.bf16.msra.mxu0 0
        %607 = vmatprep.mubr.bf16.mxu0 0
        %608 = vmatmul.mubr.bf16.gmra.mrb[0].mxu0 %v570
        %v609 = vpop.f32.mrb[0].mxu0
        %v610 = vadd.f32 0.0, %v609
        %v611 = vpop.f32.mrb[0].mxu0
        %v612 = vpop.f32.mrb[0].mxu0
        %v613 = vpop.f32.mrb[0].mxu0
        %614 = vdwg.mxu0
        %615 = vrot.lane.b32.xlu0 %v393, 112
        %v616 = vpop.permute.xlu0 %615
        %617 = vrot.lane.b32.xlu0 %v393, 80
        %v618 = vpop.permute.xlu0 %617
        %v620 = vsel %vm397, %v616, 0
        %v623 = vsel %vm397, %v618, 0
        %625 = vmatprep.subr.bf16.mxu0 0
        %626 = vmatpush1.bf16.xpose.msra.mxu0 %v623
        %627 = vmatprep.subr.bf16.mxu0 0
        %628 = vmatpush1.bf16.xpose.msra.mxu0 0
        %629 = vmatprep.subr.bf16.mxu0 0
        %630 = vmatpush1.bf16.xpose.msra.mxu0 0
        %631 = vmatprep.subr.bf16.mxu0 0
        %632 = vmatpush1.bf16.xpose.msra.mxu0 0
        %633 = vmatprep.subr.bf16.mxu0 0
        %634 = vmatpush1.bf16.xpose.msra.mxu0 0
        %635 = vmatprep.subr.bf16.mxu0 0
        %636 = vmatpush1.bf16.xpose.msra.mxu0 0
        %637 = vmatprep.subr.bf16.mxu0 0
        %638 = vmatpush1.bf16.xpose.msra.mxu0 0
        %639 = vmatprep.subr.bf16.mxu0 0
        %640 = vmatpush1.bf16.xpose.msra.mxu0 0
        %641 = vmatprep.subr.bf16.mxu0 0
        %642 = vmatpush1.bf16.xpose.msra.mxu0 0
        %643 = vmatprep.subr.bf16.mxu0 0
        %644 = vmatpush1.bf16.xpose.msra.mxu0 0
        %645 = vmatprep.subr.bf16.mxu0 0
        %646 = vmatpush1.bf16.xpose.msra.mxu0 0
        %647 = vmatprep.subr.bf16.mxu0 0
        %648 = vmatpush1.bf16.xpose.msra.mxu0 0
        %649 = vmatprep.subr.bf16.mxu0 0
        %650 = vmatpush1.bf16.xpose.msra.mxu0 0
        %651 = vmatprep.subr.bf16.mxu0 0
        %652 = vmatpush1.bf16.xpose.msra.mxu0 0
        %653 = vmatprep.subr.bf16.mxu0 0
        %654 = vmatpush1.bf16.xpose.msra.mxu0 0
        %655 = vmatprep.subr.bf16.mxu0 0
        %656 = vmatpush1.bf16.xpose.msra.mxu0 0
        %657 = vmatprep.mubr.bf16.mxu0 0
        %658 = vmatmul.mubr.bf16.gmra.mrb[0].mxu0 %v620
        %v659 = vpop.f32.mrb[0].mxu0
        %v660 = vadd.f32 0.0, %v659
        %v661 = vpop.f32.mrb[0].mxu0
        %v662 = vpop.f32.mrb[0].mxu0
        %v663 = vpop.f32.mrb[0].mxu0
        %664 = vdwg.mxu0
        %v665 = vsel %vm397, %v660, -inf
        %666 = vmax.xlane.f32.xlu0 %v665
        %v667 = vpop.xlane.xlu0 %666
        %v668 = vsub.f32 %v660, %v667
        %v669 = vmul.f32 %v668, 1.442695
        %v670 = vpow.pop %v669
        %v671 = vsel %vm397, %v670, 0.0
        %672 = vadd.xlane.f32.xlu0 %v671
        %v673 = vpop.xlane.xlu0 %672
        %v674 = vrcp.pop %v673
        %v675 = vmul.f32 %v670, %v674
        %v676 = vpack.c.bf16 %v675, %v675
        %677 = vrot.lane.b32.xlu0 %v393, 48
        %v678 = vpop.permute.xlu0 %677
        %v680 = vsel %vm397, %v676, 0
        %v683 = vsel %vm461, %v678, 0
        %685 = vmatprep.subr.bf16.mxu0 0
        %686 = vmatpush1.bf16.msra.mxu0 %v683
        %687 = vmatprep.subr.bf16.mxu0 0
        %688 = vmatpush1.bf16.msra.mxu0 0
        %689 = vmatprep.subr.bf16.mxu0 0
        %690 = vmatpush1.bf16.msra.mxu0 0
        %691 = vmatprep.subr.bf16.mxu0 0
        %692 = vmatpush1.bf16.msra.mxu0 0
        %693 = vmatprep.subr.bf16.mxu0 0
        %694 = vmatpush1.bf16.msra.mxu0 0
        %695 = vmatprep.subr.bf16.mxu0 0
        %696 = vmatpush1.bf16.msra.mxu0 0
        %697 = vmatprep.subr.bf16.mxu0 0
        %698 = vmatpush1.bf16.msra.mxu0 0
        %699 = vmatprep.subr.bf16.mxu0 0
        %700 = vmatpush1.bf16.msra.mxu0 0
        %701 = vmatprep.subr.bf16.mxu0 0
        %702 = vmatpush1.bf16.msra.mxu0 0
        %703 = vmatprep.subr.bf16.mxu0 0
        %704 = vmatpush1.bf16.msra.mxu0 0
        %705 = vmatprep.subr.bf16.mxu0 0
        %706 = vmatpush1.bf16.msra.mxu0 0
        %707 = vmatprep.subr.bf16.mxu0 0
        %708 = vmatpush1.bf16.msra.mxu0 0
        %709 = vmatprep.subr.bf16.mxu0 0
        %710 = vmatpush1.bf16.msra.mxu0 0
        %711 = vmatprep.subr.bf16.mxu0 0
        %712 = vmatpush1.bf16.msra.mxu0 0
        %713 = vmatprep.subr.bf16.mxu0 0
        %714 = vmatpush1.bf16.msra.mxu0 0
        %715 = vmatprep.subr.bf16.mxu0 0
        %716 = vmatpush1.bf16.msra.mxu0 0
        %717 = vmatprep.mubr.bf16.mxu0 0
        %718 = vmatmul.mubr.bf16.gmra.mrb[0].mxu0 %v680
        %v719 = vpop.f32.mrb[0].mxu0
        %v720 = vadd.f32 0.0, %v719
        %v721 = vpop.f32.mrb[0].mxu0
        %v722 = vpop.f32.mrb[0].mxu0
        %v723 = vpop.f32.mrb[0].mxu0
        %724 = vdwg.mxu0
        %725 = vrot.lane.b32.xlu0 %v393, 104
        %v726 = vpop.permute.xlu0 %725
        %727 = vrot.lane.b32.xlu0 %v393, 72
        %v728 = vpop.permute.xlu0 %727
        %v730 = vsel %vm397, %v726, 0
        %v733 = vsel %vm397, %v728, 0
        %735 = vmatprep.subr.bf16.mxu0 0
        %736 = vmatpush1.bf16.xpose.msra.mxu0 %v733
        %737 = vmatprep.subr.bf16.mxu0 0
        %738 = vmatpush1.bf16.xpose.msra.mxu0 0
        %739 = vmatprep.subr.bf16.mxu0 0
        %740 = vmatpush1.bf16.xpose.msra.mxu0 0
        %741 = vmatprep.subr.bf16.mxu0 0
        %742 = vmatpush1.bf16.xpose.msra.mxu0 0
        %743 = vmatprep.subr.bf16.mxu0 0
        %744 = vmatpush1.bf16.xpose.msra.mxu0 0
        %745 = vmatprep.subr.bf16.mxu0 0
        %746 = vmatpush1.bf16.xpose.msra.mxu0 0
        %747 = vmatprep.subr.bf16.mxu0 0
        %748 = vmatpush1.bf16.xpose.msra.mxu0 0
        %749 = vmatprep.subr.bf16.mxu0 0
        %750 = vmatpush1.bf16.xpose.msra.mxu0 0
        %751 = vmatprep.subr.bf16.mxu0 0
        %752 = vmatpush1.bf16.xpose.msra.mxu0 0
        %753 = vmatprep.subr.bf16.mxu0 0
        %754 = vmatpush1.bf16.xpose.msra.mxu0 0
        %755 = vmatprep.subr.bf16.mxu0 0
        %756 = vmatpush1.bf16.xpose.msra.mxu0 0
        %757 = vmatprep.subr.bf16.mxu0 0
        %758 = vmatpush1.bf16.xpose.msra.mxu0 0
        %759 = vmatprep.subr.bf16.mxu0 0
        %760 = vmatpush1.bf16.xpose.msra.mxu0 0
        %761 = vmatprep.subr.bf16.mxu0 0
        %762 = vmatpush1.bf16.xpose.msra.mxu0 0
        %763 = vmatprep.subr.bf16.mxu0 0
        %764 = vmatpush1.bf16.xpose.msra.mxu0 0
        %765 = vmatprep.subr.bf16.mxu0 0
        %766 = vmatpush1.bf16.xpose.msra.mxu0 0
        %767 = vmatprep.mubr.bf16.mxu0 0
        %768 = vmatmul.mubr.bf16.gmra.mrb[0].mxu0 %v730
        %v769 = vpop.f32.mrb[0].mxu0
        %v770 = vadd.f32 0.0, %v769
        %v771 = vpop.f32.mrb[0].mxu0
        %v772 = vpop.f32.mrb[0].mxu0
        %v773 = vpop.f32.mrb[0].mxu0
        %774 = vdwg.mxu0
        %v775 = vsel %vm397, %v770, -inf
        %776 = vmax.xlane.f32.xlu0 %v775
        %v777 = vpop.xlane.xlu0 %776
        %v778 = vsub.f32 %v770, %v777
        %v779 = vmul.f32 %v778, 1.442695
        %v780 = vpow.pop %v779
        %v781 = vsel %vm397, %v780, 0.0
        %782 = vadd.xlane.f32.xlu0 %v781
        %v783 = vpop.xlane.xlu0 %782
        %v784 = vrcp.pop %v783
        %v785 = vmul.f32 %v780, %v784
        %v786 = vpack.c.bf16 %v785, %v785
        %787 = vrot.lane.b32.xlu0 %v393, 40
        %v788 = vpop.permute.xlu0 %787
        %v790 = vsel %vm397, %v786, 0
        %v793 = vsel %vm461, %v788, 0
        %795 = vmatprep.subr.bf16.mxu0 0
        %796 = vmatpush1.bf16.msra.mxu0 %v793
        %797 = vmatprep.subr.bf16.mxu0 0
        %798 = vmatpush1.bf16.msra.mxu0 0
        %799 = vmatprep.subr.bf16.mxu0 0
        %800 = vmatpush1.bf16.msra.mxu0 0
        %801 = vmatprep.subr.bf16.mxu0 0
        %802 = vmatpush1.bf16.msra.mxu0 0
        %803 = vmatprep.subr.bf16.mxu0 0
        %804 = vmatpush1.bf16.msra.mxu0 0
        %805 = vmatprep.subr.bf16.mxu0 0
        %806 = vmatpush1.bf16.msra.mxu0 0
        %807 = vmatprep.subr.bf16.mxu0 0
        %808 = vmatpush1.bf16.msra.mxu0 0
        %809 = vmatprep.subr.bf16.mxu0 0
        %810 = vmatpush1.bf16.msra.mxu0 0
        %811 = vmatprep.subr.bf16.mxu0 0
        %812 = vmatpush1.bf16.msra.mxu0 0
        %813 = vmatprep.subr.bf16.mxu0 0
        %814 = vmatpush1.bf16.msra.mxu0 0
        %815 = vmatprep.subr.bf16.mxu0 0
        %816 = vmatpush1.bf16.msra.mxu0 0
        %817 = vmatprep.subr.bf16.mxu0 0
        %818 = vmatpush1.bf16.msra.mxu0 0
        %819 = vmatprep.subr.bf16.mxu0 0
        %820 = vmatpush1.bf16.msra.mxu0 0
        %821 = vmatprep.subr.bf16.mxu0 0
        %822 = vmatpush1.bf16.msra.mxu0 0
        %823 = vmatprep.subr.bf16.mxu0 0
        %824 = vmatpush1.bf16.msra.mxu0 0
        %825 = vmatprep.subr.bf16.mxu0 0
        %826 = vmatpush1.bf16.msra.mxu0 0
        %827 = vmatprep.mubr.bf16.mxu0 0
        %828 = vmatmul.mubr.bf16.gmra.mrb[0].mxu0 %v790
        %v829 = vpop.f32.mrb[0].mxu0
        %v830 = vadd.f32 0.0, %v829
        %v831 = vpop.f32.mrb[0].mxu0
        %v832 = vpop.f32.mrb[0].mxu0
        %v833 = vpop.f32.mrb[0].mxu0
        %834 = vdwg.mxu0
        %836 = vrot.lane.b32.xlu0 %v610, 8
        %v837 = vpop.permute.xlu0 %836
        %840 = vrot.lane.b32.xlu0 %v720, 16
        %v841 = vpop.permute.xlu0 %840
        %844 = vrot.lane.b32.xlu0 %v830, 24
        %v845 = vpop.permute.xlu0 %844
        %v847 = vsel %vm397, %v500, %v837
        %vm848 = vcmask 130048
        %v849 = vsel %vm848, %v847, %v841
        %vm850 = vcmask 195584
        %v851 = vsel %vm850, %v849, %v845
        %v852 = vpack.c.bf16 %v851, %v851
        %v853 = vld [vmem:[#allocation7] sm:$0xf]
        %v854 = vld [vmem:[#allocation7 + $0x4] sm:$0xf]
        %v855 = vld [vmem:[#allocation7 + $0x8] sm:$0xf]
        %v856 = vld [vmem:[#allocation7 + $0xc] sm:$0xf]
        %v857 = vld [vmem:[%s4] sm:$0x1]
        %v859 = vlaneseq
        %v860 = vshrl.u32 %v859, 7
        %v861 = vsub.s32 0, %v860
        %v862 = vrot.slane %v857, %v861
        %v868 = vunpack.c.l.b16 %v853
        %v869 = vunpack.c.l.b16 %v854
        %v870 = vunpack.c.l.b16 %v855
        %v871 = vunpack.c.l.b16 %v856
        %v872 = vpack.c.b16 %v869, %v868
        %v873 = vpack.c.b16 %v871, %v870
        %v877 = vsel %vm349, %v852, 0
        %879 = vmatprep.subr.bf16.mxu0 0
        %880 = vmatpush1.bf16.msra.mxu0 %v872
        %881 = vmatprep.subr.bf16.mxu0 0
        %882 = vmatpush1.bf16.msra.mxu0 %v873
        %883 = vmatprep.subr.bf16.mxu0 0
        %884 = vmatpush1.bf16.msra.mxu0 0
        %885 = vmatprep.subr.bf16.mxu0 0
        %886 = vmatpush1.bf16.msra.mxu0 0
        %887 = vmatprep.subr.bf16.mxu0 0
        %888 = vmatpush1.bf16.msra.mxu0 0
        %889 = vmatprep.subr.bf16.mxu0 0
        %890 = vmatpush1.bf16.msra.mxu0 0
        %891 = vmatprep.subr.bf16.mxu0 0
        %892 = vmatpush1.bf16.msra.mxu0 0
        %893 = vmatprep.subr.bf16.mxu0 0
        %894 = vmatpush1.bf16.msra.mxu0 0
        %895 = vmatprep.subr.bf16.mxu0 0
        %896 = vmatpush1.bf16.msra.mxu0 0
        %897 = vmatprep.subr.bf16.mxu0 0
        %898 = vmatpush1.bf16.msra.mxu0 0
        %899 = vmatprep.subr.bf16.mxu0 0
        %900 = vmatpush1.bf16.msra.mxu0 0
        %901 = vmatprep.subr.bf16.mxu0 0
        %902 = vmatpush1.bf16.msra.mxu0 0
        %903 = vmatprep.subr.bf16.mxu0 0
        %904 = vmatpush1.bf16.msra.mxu0 0
        %905 = vmatprep.subr.bf16.mxu0 0
        %906 = vmatpush1.bf16.msra.mxu0 0
        %907 = vmatprep.subr.bf16.mxu0 0
        %908 = vmatpush1.bf16.msra.mxu0 0
        %909 = vmatprep.subr.bf16.mxu0 0
        %910 = vmatpush1.bf16.msra.mxu0 0
        %911 = vmatprep.mubr.bf16.mxu0 0
        %912 = vmatmul.mubr.bf16.gmra.mrb[0].mxu0 %v877
        %v913 = vpop.f32.mrb[0].mxu0
        %v914 = vadd.f32 %v862, %v913
        %v915 = vpop.f32.mrb[0].mxu0
        %v916 = vpop.f32.mrb[0].mxu0
        %v917 = vpop.f32.mrb[0].mxu0
        %918 = vdwg.mxu0
        %v919 = vpack.c.bf16 %v914, %v914
        %v920 = vld [vmem:[%s5] sm:$0xf]
        %v921 = vld [vmem:[%s5 + $0x4] sm:$0xf]
        %v922 = vld [vmem:[%s5 + $0x8] sm:$0xf]
        %v923 = vld [vmem:[%s5 + $0xc] sm:$0xf]
        %v924 = vld [vmem:[%s6] sm:$0x1]
        %v926 = vlaneseq
        %v927 = vshrl.u32 %v926, 7
        %v928 = vsub.s32 0, %v927
        %v929 = vrot.slane %v924, %v928
        %v935 = vunpack.c.l.b16 %v920
        %v936 = vunpack.c.l.b16 %v921
        %v937 = vunpack.c.l.b16 %v922
        %v938 = vunpack.c.l.b16 %v923
        %v939 = vpack.c.b16 %v936, %v935
        %v940 = vpack.c.b16 %v938, %v937
        %v944 = vsel %vm349, %v919, 0
        %946 = vmatprep.subr.bf16.mxu0 0
        %947 = vmatpush1.bf16.msra.mxu0 %v939
        %948 = vmatprep.subr.bf16.mxu0 0
        %949 = vmatpush1.bf16.msra.mxu0 %v940
        %950 = vmatprep.subr.bf16.mxu0 0
        %951 = vmatpush1.bf16.msra.mxu0 0
        %952 = vmatprep.subr.bf16.mxu0 0
        %953 = vmatpush1.bf16.msra.mxu0 0
        %954 = vmatprep.subr.bf16.mxu0 0
        %955 = vmatpush1.bf16.msra.mxu0 0
        %956 = vmatprep.subr.bf16.mxu0 0
        %957 = vmatpush1.bf16.msra.mxu0 0
        %958 = vmatprep.subr.bf16.mxu0 0
        %959 = vmatpush1.bf16.msra.mxu0 0
        %960 = vmatprep.subr.bf16.mxu0 0
        %961 = vmatpush1.bf16.msra.mxu0 0
        %962 = vmatprep.subr.bf16.mxu0 0
        %963 = vmatpush1.bf16.msra.mxu0 0
        %964 = vmatprep.subr.bf16.mxu0 0
        %965 = vmatpush1.bf16.msra.mxu0 0
        %966 = vmatprep.subr.bf16.mxu0 0
        %967 = vmatpush1.bf16.msra.mxu0 0
        %968 = vmatprep.subr.bf16.mxu0 0
        %969 = vmatpush1.bf16.msra.mxu0 0
        %970 = vmatprep.subr.bf16.mxu0 0
        %971 = vmatpush1.bf16.msra.mxu0 0
        %972 = vmatprep.subr.bf16.mxu0 0
        %973 = vmatpush1.bf16.msra.mxu0 0
        %974 = vmatprep.subr.bf16.mxu0 0
        %975 = vmatpush1.bf16.msra.mxu0 0
        %976 = vmatprep.subr.bf16.mxu0 0
        %977 = vmatpush1.bf16.msra.mxu0 0
        %978 = vmatprep.mubr.bf16.mxu0 0
        %979 = vmatmul.mubr.bf16.gmra.mrb[0].mxu0 %v944
        %v980 = vpop.f32.mrb[0].mxu0
        %v981 = vadd.f32 %v929, %v980
        %v982 = vpop.f32.mrb[0].mxu0
        %v983 = vpop.f32.mrb[0].mxu0
        %v984 = vpop.f32.mrb[0].mxu0
        %985 = vdwg.mxu0
        %v986 = vtanh.pop %v981
        %v987 = vadd.f32 %v324, %v986
        %988 = vst.msk [vmem:[%s322] sm:$0xff] %vm349, %v987
        %s989 = sand.u32 %s185, 1
        %s990 = scalar_lea.sflag [#allocation4], %s989
        %s991 = sand.u32 %s185, 1
        %s992 = smul.addr %s991, 8
        %s993 = scalar_lea.vmem [#allocation8], %s992
        // Predicated region
        $region61: #{tpu_custom_call.1} parent=47 // pred_check
          %p994 = pneg %p195
        $region62: #{tpu_custom_call.1} parent=47 // pred_check_branch
          %996 = sbr.rel (%p994) target = $region64
        $region63: #{tpu_custom_call.1} parent=47 // pred_region
          %s998 = ssub.s32 128, 128
          %999 = vsyncadd %s990, %s998
          %s1000 = smul.addr %s25, 128
          %s1001 = scalar_lea.hbm %s7, %s1000
          %s1003 = sshll.u32 %s993, 4
          %s1004 = int_to_ptr.vmem [resolvable:$true] %s1003
          %1006 = dma.vmem_to_hbm [thread:$0]  %s1004, 128, %s1001, %s990
        $region64: #{tpu_custom_call.1} parent=47 // pred_fallthru
          _
      $region48: #{tpu_custom_call.1} parent=5 // pred_fallthru
        _
      %p1007 = scmp.le.s32.totalorder 2, %s20
      // Predicated region
      $region65: #{tpu_custom_call.1} parent=5 // pred_check
        %p1008 = pneg %p1007
      $region66: #{tpu_custom_call.1} parent=5 // pred_check_branch
        %1010 = sbr.rel (%p1008) target = $region68
      $region67: #{tpu_custom_call.1} parent=5 // pred_region
        %s1011 = ssub.s32 %s20, 2
        // Predicated region
        $region69: #{tpu_custom_call.1} parent=67 // pred_check
          %p1012 = pneg %p201
        $region70: #{tpu_custom_call.1} parent=67 // pred_check_branch
          %1014 = sbr.rel (%p1012) target = $region72
        $region71: #{tpu_custom_call.1} parent=67 // pred_region
          %s1015 = sand.u32 %s186, 1
          %s1016 = scalar_lea.sflag [#allocation4], %s1015
          %s1017 = sand.u32 %s186, 1
          %s1018 = smul.addr %s1017, 8
          %s1019 = scalar_lea.vmem [#allocation8], %s1018
          %1020 = dma.done %s1016, 128
        $region72: #{tpu_custom_call.1} parent=67 // pred_fallthru
          _
      $region68: #{tpu_custom_call.1} parent=5 // pred_fallthru
        _
    $region6: #{tpu_custom_call.1} parent=1 // loop_footer
      %s24 = sadd.s32 1, %s20
    $region7: #{tpu_custom_call.1} parent=1 // loop_footer_branch
      %19 = sbr.rel target = $region3
    $region8: #{tpu_custom_call.1} parent=1 // loop_exit
      _
    %1021 = vsyncpa [#allocation3], 1
    %s1022 = scalar_lea.sflag [#allocation3], 1
    %1023 = vsyncpa %s1022, 1
    %1024 = vsyncpa [#allocation6], 1
    %1025 = vsyncpa [#allocation4], 1
    %s1026 = scalar_lea.sflag [#allocation4], 1
    %1027 = vsyncpa %s1026, 1

</llo_original>
